<compile_context>
chip_gen: v7x
topology: tpu7x:2x2x1
jax: 0.10.0
libtpu: 0.0.40
codegen_flags: <defaults>
</compile_context>

<pallas_src>
import functools

import jax
import jax.numpy as jnp
from jax.experimental import pallas as pl
from jax.experimental.pallas import tpu as pltpu


# ----------------------------------------------------------------------------
# pltpu.roll sign probe (cached; one tiny pallas_call, run once).
# The kernel needs tap[:, p] = z[:, p + shift]; detect the hardware roll
# convention instead of hard-coding the sign.
# ----------------------------------------------------------------------------
@functools.lru_cache(maxsize=None)
def _roll_matches_jnp_roll() -> bool:
    def probe(x_ref, o_ref):
        o_ref[...] = pltpu.roll(x_ref[...], 1, axis=1)

    x = jnp.broadcast_to(jnp.arange(128, dtype=jnp.float32)[None, :], (8, 128))
    out = pl.pallas_call(
        probe, out_shape=jax.ShapeDtypeStruct((8, 128), jnp.float32))(x)
    # jnp.roll semantics (out[i] = x[(i - shift) % n]) -> out[0, 0] == 127.
    return int(out[0, 0]) == 127


# ----------------------------------------------------------------------------
# Fused whole-DenseBlock kernel.  One grid step = a group of whole images
# flattened onto the lane axis.
#   x_ref  : (c0, Lw)                f32   input channels, lane-flat spatial
#   bn_ref : (L, c_bn, 2)            f32   rows [0:c_in): (s1, t1); rows
#                                          [c_in_max : c_in_max+c_mid): (t2, 0)
#   w1_ref : (L, c_mid, c_in_max)    bf16  1x1 conv weights, BN2 scale folded,
#                                          zero-padded past c_in
#   w2_ref : (L, growth, 9*c_mid)    bf16  3x3 conv weights, tap-major im2col
#   o_ref  : (c_final, Lw)           f32   output block == activation buffer
# ----------------------------------------------------------------------------
def _dense_block_kernel(x_ref, bn_ref, w1_ref, w2_ref, o_ref, *,
                        num_layers, c0, growth, c_mid, c_in_max, H, W,
                        roll_jnp_sign, mxu_dtype):
    HW = H * W
    Lw = o_ref.shape[-1]                      # lanes this step (whole images)

    # ---- hoisted per-image coordinates and the 9 border masks (layer-free).
    # pos % HW gives within-image coordinates, so the masks also kill
    # cross-image leakage through the lane rolls.
    pos = jax.lax.broadcasted_iota(jnp.int32, (1, Lw), 1) % HW
    xcol = pos % W
    yrow = pos // W
    valid = []
    for k in range(9):
        oy, ox = k // 3 - 1, k % 3 - 1
        conds = []
        if ox:
            conds.append((xcol >= -ox) & (xcol < W - ox))
        if oy:
            conds.append((yrow >= -oy) & (yrow < H - oy))
        if not conds:
            valid.append(None)
        elif len(conds) == 1:
            valid.append(conds[0])
        else:
            valid.append(conds[0] & conds[1])

    # ---- activation accumulates in place in the VMEM-resident output block.
    o_ref[0:c0, :] = x_ref[...]

    for i in range(num_layers):                 # statically unrolled
        c_in = c0 + i * growth

        bn_i = bn_ref[i]                                  # (c_bn, 2) f32
        s1 = bn_i[0:c_in, 0:1]                            # (c_in, 1)
        t1 = bn_i[0:c_in, 1:2]
        t2 = bn_i[c_in_max:c_in_max + c_mid, 0:1]         # (c_mid, 1)

        act = o_ref[0:c_in, :]                            # written prefix, f32

        # BN1 + ReLU (f32 VPU), then 1x1 conv as one weight-stationary MXU
        # matmul.  BN2's scale is pre-folded into w1; only the shift remains.
        y = jnp.maximum(act * s1 + t1, 0.0).astype(mxu_dtype)
        w1 = w1_ref[i][:, 0:c_in]                         # (c_mid, c_in) bf16
        mid = jnp.dot(w1, y, preferred_element_type=jnp.float32)  # (c_mid, Lw)
        z = jnp.maximum(mid + t2, 0.0).astype(mxu_dtype)  # bf16 once, pre-taps

        # im2col for the 3x3 / pad=1 conv: 9 lane-rotated (XLU), border-masked
        # bf16 copies of z stacked on the sublane axis.
        taps = []
        for k in range(9):
            oy, ox = k // 3 - 1, k % 3 - 1
            shift = oy * W + ox                   # want tap[:, p] = z[:, p+shift]
            if shift == 0:
                tap = z
            else:
                amt = (-shift if roll_jnp_sign else shift) % Lw
                tap = pltpu.roll(z, amt, axis=1)
            if valid[k] is not None:
                tap = jnp.where(valid[k], tap, 0.0).astype(mxu_dtype)
            taps.append(tap)
        col = jnp.concatenate(taps, axis=0)               # (9*c_mid, Lw) bf16

        # 3x3 conv == one (growth, 9*c_mid) @ (9*c_mid, Lw) MXU matmul.
        # (dropout_p == 0.0 -> dropout is the identity.)
        new_feat = jnp.dot(w2_ref[i], col, preferred_element_type=jnp.float32)
        o_ref[c_in:c_in + growth, :] = new_feat            # in-place "concat"


def _num_grid_steps(n_images, hw):
    """Smallest step count >= 2 dividing N with a 128-multiple lane tile
    (keeps both v7x TensorCores fed); otherwise one full-width step."""
    if n_images >= 2:
        for s in range(2, n_images + 1):
            if n_images % s == 0 and ((n_images // s) * hw) % 128 == 0:
                return s
    return 1


# ----------------------------------------------------------------------------
# Wrapper: folds BN, packs parameters, lays out data, builds the pallas_call.
# ----------------------------------------------------------------------------
def dense_block_forward(x_nchw, params, eps=1e-5, mxu_dtype=jnp.bfloat16):
    """x_nchw: (N, C0, H, W) f32 -> (N, C0 + L*growth, H, W) f32 (NCHW)."""
    N, c0, H, W = x_nchw.shape
    HW = H * W
    L = len(params)
    c_mid = params[0]["w1"].shape[0]
    growth = params[0]["w2"].shape[0]
    c_final = c0 + L * growth
    c_in_max = c0 + (L - 1) * growth
    c_bn = c_in_max + c_mid

    # ---- pack all per-layer parameters into 3 slabs (6L+1 operands -> 4) ----
    bn_rows, w1_rows, w2_rows = [], [], []
    for i, p in enumerate(params):
        c_in = c0 + i * growth
        assert p["w1"].shape == (c_mid, c_in, 1, 1)
        assert p["w2"].shape == (growth, c_mid, 3, 3)
        # Inference-mode BN folded to per-channel scale/shift.
        s1 = p["g1"] / jnp.sqrt(p["v1"] + eps)
        t1 = p["b1"] - p["m1"] * s1
        s2 = p["g2"] / jnp.sqrt(p["v2"] + eps)
        t2 = p["b2"] - p["m2"] * s2
        bn_i = jnp.zeros((c_bn, 2), jnp.float32)
        bn_i = bn_i.at[:c_in, 0].set(s1).at[:c_in, 1].set(t1)
        bn_i = bn_i.at[c_in_max:c_in_max + c_mid, 0].set(t2)
        bn_rows.append(bn_i)
        # 1x1 conv weight with BN2's scale folded in (exact), bf16, padded.
        w1 = (s2[:, None] * p["w1"].reshape(c_mid, c_in)).astype(mxu_dtype)
        w1_rows.append(jnp.zeros((c_mid, c_in_max), mxu_dtype)
                       .at[:, :c_in].set(w1))
        # 3x3 conv weight (growth, c_mid, 3, 3) -> (growth, 9*c_mid), tap-major:
        # column (ky*3+kx)*c_mid + ci multiplies the tap-(ky,kx) copy of ch ci.
        w2_rows.append(p["w2"].transpose(0, 2, 3, 1)
                       .reshape(growth, 9 * c_mid).astype(mxu_dtype))
    bn_all = jnp.stack(bn_rows)                 # (L, c_bn, 2)         f32
    w1_all = jnp.stack(w1_rows)                 # (L, c_mid, c_in_max) bf16
    w2_all = jnp.stack(w2_rows)                 # (L, growth, 9*c_mid) bf16

    # ---- flatten batch into the lane axis: (C, N*HW) ------------------------
    x_flat = x_nchw.reshape(N, c0, HW).transpose(1, 0, 2).reshape(c0, N * HW)

    steps = _num_grid_steps(N, HW)
    Lw = (N // steps) * HW                      # lanes per grid step

    kernel = functools.partial(
        _dense_block_kernel, num_layers=L, c0=c0, growth=growth, c_mid=c_mid,
        c_in_max=c_in_max, H=H, W=W,
        roll_jnp_sign=_roll_matches_jnp_roll(), mxu_dtype=mxu_dtype)

    out_flat = pl.pallas_call(
        kernel,
        out_shape=jax.ShapeDtypeStruct((c_final, N * HW), jnp.float32),
        grid=(steps,),
        in_specs=[
            pl.BlockSpec((c0, Lw), lambda g: (0, g)),
            pl.BlockSpec((L, c_bn, 2), lambda g: (0, 0, 0)),
            pl.BlockSpec((L, c_mid, c_in_max), lambda g: (0, 0, 0)),
            pl.BlockSpec((L, growth, 9 * c_mid), lambda g: (0, 0, 0)),
        ],
        out_specs=pl.BlockSpec((c_final, Lw), lambda g: (0, g)),
        # Per-step VMEM is tiny at these sizes.  At realistic DenseNet shapes
        # (HW up to 56*56, c_final ~ 1024) the lane axis must be tiled with
        # halos and the tile re-derived for v7x's 64 MiB VMEM (or set
        # vmem_limit_bytes explicitly).
        compiler_params=pltpu.CompilerParams(
            dimension_semantics=("parallel",)),
    )(x_flat, bn_all, w1_all, w2_all)

    return (out_flat.reshape(c_final, N, HW).transpose(1, 0, 2)
            .reshape(N, c_final, H, W))


# ----------------------------------------------------------------------------
# Pure-JAX reference (NCHW, lax.conv) mirroring the PyTorch module and the
# kernel's bf16 operand rounding points -- used for in-script validation.
# ----------------------------------------------------------------------------
def dense_block_reference(x_nchw, params, eps=1e-5, mxu_dtype=jnp.bfloat16):
    dn = ("NCHW", "OIHW", "NCHW")
    hi = jax.lax.Precision.HIGHEST
    x = x_nchw
    for p in params:
        s1 = p["g1"] / jnp.sqrt(p["v1"] + eps)
        t1 = p["b1"] - p["m1"] * s1
        s2 = p["g2"] / jnp.sqrt(p["v2"] + eps)
        t2 = p["b2"] - p["m2"] * s2
        y = jnp.maximum(x * s1[None, :, None, None]
                        + t1[None, :, None, None], 0.0)
        y = y.astype(mxu_dtype).astype(jnp.float32)
        # Mirror the kernel's folding of BN2's scale into the 1x1 weight
        # (mathematically identical to conv -> scale; ReLU follows the shift).
        w1 = (s2[:, None, None, None] * p["w1"]
              ).astype(mxu_dtype).astype(jnp.float32)
        mid = jax.lax.conv_general_dilated(
            y, w1, window_strides=(1, 1), padding="VALID",
            dimension_numbers=dn, precision=hi)
        z = jnp.maximum(mid + t2[None, :, None, None], 0.0)
        z = z.astype(mxu_dtype).astype(jnp.float32)
        w2 = p["w2"].astype(mxu_dtype).astype(jnp.float32)
        nf = jax.lax.conv_general_dilated(
            z, w2, window_strides=(1, 1), padding=((1, 1), (1, 1)),
            dimension_numbers=dn, precision=hi)
        x = jnp.concatenate([x, nf], axis=1)
    return x


# ----------------------------------------------------------------------------
# Deterministic synthetic parameters in PyTorch-native layouts.
# ----------------------------------------------------------------------------
def init_dense_block_params(key, num_layers, num_input_features, bn_size,
                            growth_rate):
    params = []
    c_in = num_input_features
    c_mid = bn_size * growth_rate
    for _ in range(num_layers):
        key, *ks = jax.random.split(key, 11)
        params.append(dict(
            # BatchNorm2d(c_in): gamma, beta, running_mean, running_var
            g1=1.0 + 0.1 * jax.random.normal(ks[0], (c_in,), jnp.float32),
            b1=0.1 * jax.random.normal(ks[1], (c_in,), jnp.float32),
            m1=0.1 * jax.random.normal(ks[2], (c_in,), jnp.float32),
            v1=0.5 + jnp.abs(jax.random.normal(ks[3], (c_in,), jnp.float32)),
            # Conv2d(c_in, c_mid, 1, bias=False), OIHW
            w1=0.2 * jax.random.normal(ks[4], (c_mid, c_in, 1, 1), jnp.float32),
            # BatchNorm2d(c_mid)
            g2=1.0 + 0.1 * jax.random.normal(ks[5], (c_mid,), jnp.float32),
            b2=0.1 * jax.random.normal(ks[6], (c_mid,), jnp.float32),
            m2=0.1 * jax.random.normal(ks[7], (c_mid,), jnp.float32),
            v2=0.5 + jnp.abs(jax.random.normal(ks[8], (c_mid,), jnp.float32)),
            # Conv2d(c_mid, growth, 3, pad=1, bias=False), OIHW
            w2=0.2 * jax.random.normal(ks[9], (growth_rate, c_mid, 3, 3),
                                       jnp.float32),
        ))
        c_in += growth_rate
    return params


if __name__ == "__main__":
    # DenseBlock(num_layers=2, num_input_features=4, bn_size=2, growth_rate=4,
    #            dropout_p=0.0) on a (2, 4, 16, 16) NCHW input.
    num_layers, c0, bn_size, growth = 2, 4, 2, 4
    N, H, W = 2, 16, 16

    key = jax.random.PRNGKey(0)
    k_x, k_p = jax.random.split(key)
    x = jax.random.normal(k_x, (N, c0, H, W), dtype=jnp.float32)   # NCHW
    params = init_dense_block_params(k_p, num_layers, c0, bn_size, growth)

    out = dense_block_forward(x, params)
    jax.block_until_ready(out)

    ref = dense_block_reference(x, params)
    expected = (N, c0 + num_layers * growth, H, W)
    assert out.shape == expected, out.shape
    assert bool(jnp.all(jnp.isfinite(out)))
    # Loose-ish tolerance only because MXU operands are bf16; real layout /
    # roll-sign / tap-ordering / BN-folding bugs show up as O(0.1-1) errors.
    assert bool(jnp.allclose(out, ref, rtol=2e-2, atol=2e-2)), \
        float(jnp.max(jnp.abs(out - ref)))
    print("KERNEL_OK")
</pallas_src>

<mosaic_0001>
module attributes {stable_mosaic.version = 11 : i64} {
  func.func @probe(%arg0: memref<8x128xf32, #tpu.memory_space<vmem>>, %arg1: memref<8x128xf32, #tpu.memory_space<vmem>>) attributes {dimension_semantics = [], scalar_prefetch = 0 : i64, scratch_operands = 0 : i64, tpu.core_type = #tpu.core_type<tc>} {
    %c0 = arith.constant 0 : index
    %c0_0 = arith.constant 0 : index
    %0 = vector.load %arg0[%c0, %c0_0] : memref<8x128xf32, #tpu.memory_space<vmem>>, vector<8x128xf32>
    %c1_i32 = arith.constant 1 : i32
    %1 = tpu.dynamic_rotate %0 by %c1_i32 dim 1 : vector<8x128xf32>, i32 -> vector<8x128xf32>
    %c0_1 = arith.constant 0 : index
    %c0_2 = arith.constant 0 : index
    %2 = vector.load %arg1[%c0_1, %c0_2] : memref<8x128xf32, #tpu.memory_space<vmem>>, vector<8x128xf32>
    tpu.vector_store %arg1[%c0_1, %c0_2], %1 {strides = array<i32>} : memref<8x128xf32, #tpu.memory_space<vmem>>, vector<8x128xf32>,
    return
  }
}

</mosaic_0001>

<llo_original>
// kernel: tpu_custom_call.1
$region0: #{tpu_custom_call.1}
  #allocation0 [shape = 'u32[]', space=smem, size = 0x4, offset = 0x4, fixed_abs, tag = 'smem constant byte address 0x4 - core index']
  #allocation1 [shape = 'u32[144,128]{1,0:T(1,128)}', space=vmem, size = 0x12000, scoped, tag = 'internal scratch']
  %s0 = inlined_call_operand.hbm [shape: f32[8,128], index: 0, kind: input, shape index: {}]
  %s1 = inlined_call_operand.hbm [shape: f32[8,128], index: 1, kind: output, shape index: {}]
  %s2 = sld [smem:[#allocation0]]
  $region18: #{tpu_custom_call.1} parent=0
    _
  %s4 = ssub.s32 1, %s2
  %s5 = scalar_select 0, %s4, %s2
  $region1: #{tpu_custom_call.1} parent=0
    #allocation2 [shape = 'u8[4096]{0}', space=vmem, size = 0x1000, scoped, tag = 'input window, operand 0, single buffered']
    #allocation3 [shape = 's32[1]{0}', space=sflag, size = 0x4, scoped, tag = 'scoped memory for tpu_custom_call.1']
    #allocation4 [shape = 's32[1]{0}', space=sflag, size = 0x4, scoped, tag = 'scoped memory for tpu_custom_call.1']
    #allocation5 [shape = 'u8[4096]{0}', space=vmem, size = 0x1000, scoped, tag = 'output window, operand 0, single buffered']
    %6 = vsyncpa [#allocation3], 0
    %7 = vsyncpa [#allocation4], 0
    // Predicated region
    $region2: #{tpu_custom_call.1} parent=1 // pred_check
      _
    $region3: #{tpu_custom_call.1} parent=1 // pred_check_branch
      %9 = sbr.rel (0) target = $region5
    $region4: #{tpu_custom_call.1} parent=1 // pred_region
      %s11 = ssub.s32 128, 128
      %12 = vsyncadd [#allocation3], %s11
      %s14 = sshll.u32 [#allocation2], 4
      %s15 = int_to_ptr.vmem [resolvable:$true] %s14
      %17 = dma.hbm_to_vmem [thread:$0]  %s0, 128, %s15, [#allocation3]
    $region5: #{tpu_custom_call.1} parent=1 // pred_fallthru
      _
    // Predicated region
    $region6: #{tpu_custom_call.1} parent=1 // pred_check
      _
    $region7: #{tpu_custom_call.1} parent=1 // pred_check_branch
      %19 = sbr.rel (0) target = $region9
    $region8: #{tpu_custom_call.1} parent=1 // pred_region
      %20 = dma.done [#allocation3], 128
    $region9: #{tpu_custom_call.1} parent=1 // pred_fallthru
      _
    %v21 = vld [vmem:[#allocation2] sm:$0xff]
    %22 = vrot.lane.b32.xlu0 %v21, 1
    %v23 = vpop.permute.xlu0 %22
    %24 = vst [vmem:[#allocation5] sm:$0xff] %v23
    // Predicated region
    $region10: #{tpu_custom_call.1} parent=1 // pred_check
      _
    $region11: #{tpu_custom_call.1} parent=1 // pred_check_branch
      %26 = sbr.rel (0) target = $region13
    $region12: #{tpu_custom_call.1} parent=1 // pred_region
      %s28 = ssub.s32 128, 128
      %29 = vsyncadd [#allocation4], %s28
      %s31 = sshll.u32 [#allocation5], 4
      %s32 = int_to_ptr.vmem [resolvable:$true] %s31
      %34 = dma.vmem_to_hbm [thread:$0]  %s32, 128, %s1, [#allocation4]
    $region13: #{tpu_custom_call.1} parent=1 // pred_fallthru
      _
    // Predicated region
    $region14: #{tpu_custom_call.1} parent=1 // pred_check
      _
    $region15: #{tpu_custom_call.1} parent=1 // pred_check_branch
      %36 = sbr.rel (0) target = $region17
    $region16: #{tpu_custom_call.1} parent=1 // pred_region
      %37 = dma.done [#allocation4], 128
    $region17: #{tpu_custom_call.1} parent=1 // pred_fallthru
      _
    %38 = vsyncpa [#allocation3], 1
    %39 = vsyncpa [#allocation4], 1

</llo_original>
